<compile_context>
chip_gen: v7x
topology: tpu7x:2x2x1
jax: 0.10.0
libtpu: 0.0.40
codegen_flags: <defaults>
</compile_context>

<pallas_src>
import functools

import jax
import jax.numpy as jnp
from jax.experimental import pallas as pl
from jax.experimental.pallas import tpu as pltpu

NPAD = 128  # lane-dense fused-head width (exactly one 128-lane tile)


def _round_up(x, m):
    return ((x + m - 1) // m) * m


def actor_critic_kernel(x_ref, wfc_ref, bfc_ref, whead_ref, bhead_ref,
                        out_ref, *, action_dim):
    # ---- fc + relu (bf16 MXU matmul, f32 accumulate, VPU relu) ----
    x = x_ref[...].astype(jnp.bfloat16)          # in-kernel cast, hidden by MXU
    h = jnp.dot(x, wfc_ref[...],
                preferred_element_type=jnp.float32) + bfc_ref[...]
    h = jnp.maximum(h, 0.0)

    # ---- fused policy|value head: one (tm, H) @ (H, 128) matmul ----
    head = jnp.dot(h.astype(whead_ref.dtype), whead_ref[...],
                   preferred_element_type=jnp.float32) + bhead_ref[...]

    # lanes [0, A): policy logits, lane A: value, lanes > A: zero padding
    lane = jax.lax.broadcasted_iota(jnp.int32, head.shape, dimension=1)
    is_logit = lane < action_dim

    # numerically stable softmax over the policy lanes only (all in f32)
    logits = jnp.where(is_logit, head, jnp.full_like(head, -1e30))
    m = jnp.max(logits, axis=-1, keepdims=True)
    e = jnp.exp(logits - m)                       # padded/value lanes -> 0
    denom = jnp.sum(e, axis=-1, keepdims=True)
    probs = e * pl.reciprocal(denom, approx=True)

    # packed lane-dense output: [probs | value | zeros]
    # probs is exactly 0 on lanes >= A (exp underflow), so one add suffices.
    out = probs + jnp.where(lane == action_dim, head, 0.0)
    out_ref[...] = out.astype(out_ref.dtype)


def fuse_params(params):
    """Fuse policy+value heads, pad to 128 lanes, cast matmul weights to bf16.

    Done once (outside the kernel / per-call hot path)."""
    w_fc, b_fc, w_pi, b_pi, w_v, b_v = params
    H = w_fc.shape[1]
    A = w_pi.shape[1]
    assert A + 1 <= NPAD, "action_dim + 1 must fit in one 128-lane tile"

    w_head = jnp.zeros((H, NPAD), jnp.float32)
    w_head = w_head.at[:, :A].set(w_pi).at[:, A:A + 1].set(w_v)
    b_head = jnp.zeros((1, NPAD), jnp.float32)
    b_head = b_head.at[:, :A].set(b_pi).at[:, A:A + 1].set(b_v)

    return (w_fc.astype(jnp.bfloat16), b_fc.astype(jnp.float32),
            w_head.astype(jnp.bfloat16), b_head.astype(jnp.float32), A)


def _pick_tm(B, H):
    """Batch tile: multiple of 16 (bf16 sublanes), budgeted against the
    (tm, H) f32 hidden intermediate, minimal padding, and >=2 grid steps
    when the batch allows (so both v7x TensorCores get work)."""
    tm_cap = 256 if H >= 2048 else 512
    if B <= 16:
        return _round_up(B, 8)
    n_steps = max(2, pl.cdiv(B, tm_cap))
    return min(tm_cap, _round_up(pl.cdiv(B, n_steps), 16))


def actor_critic_a2c_forward(state, fused_params, tm=None):
    """state: (B, input_dim) f32.  Returns (probs (B, A), value (B, 1)) in f32."""
    w_fc_bf, b_fc, w_head_bf, b_head, A = fused_params
    B, input_dim = state.shape
    H = w_fc_bf.shape[1]

    if tm is None:
        tm = _pick_tm(B, H)

    grid = (pl.cdiv(B, tm),)

    # ---- VMEM budget (weights single-buffered, state/out double-buffered) ----
    weight_bytes = (input_dim * H * 2 + H * 4 + H * NPAD * 2 + NPAD * 4)
    state_bytes = 2 * tm * input_dim * 4          # f32 state tile, 2 buffers
    out_bytes = 2 * tm * NPAD * 2                 # bf16 out tile, 2 buffers
    interm_bytes = tm * H * (4 + 2) + tm * NPAD * 4   # f32 h + bf16 copy + head
    vmem_limit = int(1.5 * (weight_bytes + state_bytes + out_bytes + interm_bytes))
    vmem_limit = max(4 << 20, min(vmem_limit, 100 << 20))

    cost = pl.CostEstimate(
        flops=2 * B * (input_dim * H + H * NPAD),
        transcendentals=B * NPAD,
        bytes_accessed=(B * input_dim * 4          # f32 state read
                        + weight_bytes             # resident weights
                        + B * NPAD * 2),           # bf16 output write
    )

    out = pl.pallas_call(
        functools.partial(actor_critic_kernel, action_dim=A),
        out_shape=jax.ShapeDtypeStruct((B, NPAD), jnp.bfloat16),
        grid=grid,
        in_specs=[
            # streamed state tile (double-buffered by default; deepen with
            # pl.Buffered(3) only if profiling shows the DMA exposed)
            pl.BlockSpec((tm, input_dim), lambda i: (i, 0)),
            # resident weights/biases: constant index -> single-buffer them
            pl.BlockSpec((input_dim, H), lambda i: (0, 0),
                         pipeline_mode=pl.Buffered(1)),
            pl.BlockSpec((1, H), lambda i: (0, 0),
                         pipeline_mode=pl.Buffered(1)),
            pl.BlockSpec((H, NPAD), lambda i: (0, 0),
                         pipeline_mode=pl.Buffered(1)),
            pl.BlockSpec((1, NPAD), lambda i: (0, 0),
                         pipeline_mode=pl.Buffered(1)),
        ],
        out_specs=pl.BlockSpec((tm, NPAD), lambda i: (i, 0)),
        compiler_params=pltpu.CompilerParams(
            dimension_semantics=("parallel",),
            vmem_limit_bytes=vmem_limit),
        cost_estimate=cost,
    )(state, w_fc_bf, b_fc, w_head_bf, b_head)

    probs = out[:, :A].astype(jnp.float32)
    value = out[:, A:A + 1].astype(jnp.float32)
    return probs, value


def init_params(key, input_dim, action_dim, hidden_dim):
    """Deterministic synthetic params (PyTorch-Linear-like uniform fan-in init)."""
    ks = jax.random.split(key, 6)

    def lin(kw, kb, fan_in, fan_out):
        bound = 1.0 / jnp.sqrt(fan_in)
        w = jax.random.uniform(kw, (fan_in, fan_out), jnp.float32, -bound, bound)
        b = jax.random.uniform(kb, (1, fan_out), jnp.float32, -bound, bound)
        return w, b

    w_fc, b_fc = lin(ks[0], ks[1], input_dim, hidden_dim)
    w_pi, b_pi = lin(ks[2], ks[3], hidden_dim, action_dim)
    w_v, b_v = lin(ks[4], ks[5], hidden_dim, 1)
    return (w_fc, b_fc, w_pi, b_pi, w_v, b_v)


def reference_forward(state, params):
    w_fc, b_fc, w_pi, b_pi, w_v, b_v = params
    h = jnp.maximum(state @ w_fc + b_fc, 0.0)
    logits = h @ w_pi + b_pi
    probs = jax.nn.softmax(logits, axis=-1)
    value = h @ w_v + b_v
    return probs, value


if __name__ == "__main__":
    input_dim, action_dim, hidden_dim = 16, 4, 32
    batch = 8

    key = jax.random.PRNGKey(0)
    k_state, k_params = jax.random.split(key)
    state = jax.random.normal(k_state, (batch, input_dim), jnp.float32)
    params = init_params(k_params, input_dim, action_dim, hidden_dim)

    fused = fuse_params(params)
    probs, value = actor_critic_a2c_forward(state, fused)
    jax.block_until_ready((probs, value))

    # Cross-check against a plain-JAX f32 reference of the same math.
    # Tolerances account for bf16 matmul operands, bf16 output slab, and the
    # approximate reciprocal in the softmax denominator.
    ref_probs, ref_value = reference_forward(state, params)
    assert probs.shape == (batch, action_dim) and value.shape == (batch, 1)
    assert jnp.allclose(probs, ref_probs, atol=2e-2, rtol=2e-2)
    assert jnp.allclose(value, ref_value, atol=2e-2, rtol=2e-2)
    assert jnp.allclose(jnp.sum(probs, axis=-1), 1.0, atol=2e-2)

    print("KERNEL_OK")
</pallas_src>

<mosaic_0001>
module attributes {stable_mosaic.version = 11 : i64} {
  func.func @actor_critic_kernel(%arg0: i32, %arg1: memref<8x16xf32, #tpu.memory_space<vmem>>, %arg2: memref<16x32xbf16, #tpu.memory_space<vmem>>, %arg3: memref<1x32xf32, #tpu.memory_space<vmem>>, %arg4: memref<32x128xbf16, #tpu.memory_space<vmem>>, %arg5: memref<1x128xf32, #tpu.memory_space<vmem>>, %arg6: memref<8x128xbf16, #tpu.memory_space<vmem>>) attributes {dimension_semantics = [#tpu.dimension_semantics<parallel>], iteration_bounds = array<i64: 1>, scalar_prefetch = 0 : i64, scratch_operands = 0 : i64, tpu.core_type = #tpu.core_type<tc>, window_params = [{transform_indices = @transform_0, window_bounds = array<i64: 8, 16>}, {pipeline_mode = #tpu.pipeline_mode<synchronous>, transform_indices = @transform_1, window_bounds = array<i64: 16, 32>}, {pipeline_mode = #tpu.pipeline_mode<synchronous>, transform_indices = @transform_2, window_bounds = array<i64: 1, 32>}, {pipeline_mode = #tpu.pipeline_mode<synchronous>, transform_indices = @transform_3, window_bounds = array<i64: 32, 128>}, {pipeline_mode = #tpu.pipeline_mode<synchronous>, transform_indices = @transform_4, window_bounds = array<i64: 1, 128>}, {transform_indices = @transform_5, window_bounds = array<i64: 8, 128>}]} {
    %c0 = arith.constant 0 : index
    %c0_0 = arith.constant 0 : index
    %0 = vector.load %arg1[%c0, %c0_0] : memref<8x16xf32, #tpu.memory_space<vmem>>, vector<8x16xf32>
    %1 = arith.truncf %0 : vector<8x16xf32> to vector<8x16xbf16>
    %c0_1 = arith.constant 0 : index
    %c0_2 = arith.constant 0 : index
    %2 = vector.load %arg2[%c0_1, %c0_2] : memref<16x32xbf16, #tpu.memory_space<vmem>>, vector<16x32xbf16>
    %cst = arith.constant dense<0.000000e+00> : vector<8x32xf32>
    %3 = tpu.matmul %1, %2, %cst {dimension_numbers = #tpu.dot_dimension_numbers<[1], [0], [0], [1], [0, 0, 1, 1], [], []>} : vector<8x16xbf16>, vector<16x32xbf16>, vector<8x32xf32> -> vector<8x32xf32>
    %c0_3 = arith.constant 0 : index
    %c0_4 = arith.constant 0 : index
    %4 = vector.load %arg3[%c0_3, %c0_4] : memref<1x32xf32, #tpu.memory_space<vmem>>, vector<1x32xf32>
    %5 = vector.broadcast %4 : vector<1x32xf32> to vector<8x32xf32>
    %6 = arith.addf %3, %5 : vector<8x32xf32>
    %cst_5 = arith.constant 0.000000e+00 : f32
    %7 = vector.broadcast %cst_5 : f32 to vector<8x32xf32>
    %8 = arith.maximumf %6, %7 : vector<8x32xf32>
    %9 = arith.truncf %8 : vector<8x32xf32> to vector<8x32xbf16>
    %c0_6 = arith.constant 0 : index
    %c0_7 = arith.constant 0 : index
    %10 = vector.load %arg4[%c0_6, %c0_7] : memref<32x128xbf16, #tpu.memory_space<vmem>>, vector<32x128xbf16>
    %cst_8 = arith.constant dense<0.000000e+00> : vector<8x128xf32>
    %11 = tpu.matmul %9, %10, %cst_8 {dimension_numbers = #tpu.dot_dimension_numbers<[1], [0], [0], [1], [0, 0, 1, 1], [], []>} : vector<8x32xbf16>, vector<32x128xbf16>, vector<8x128xf32> -> vector<8x128xf32>
    %c0_9 = arith.constant 0 : index
    %c0_10 = arith.constant 0 : index
    %12 = vector.load %arg5[%c0_9, %c0_10] : memref<1x128xf32, #tpu.memory_space<vmem>>, vector<1x128xf32>
    %13 = vector.broadcast %12 : vector<1x128xf32> to vector<8x128xf32>
    %14 = arith.addf %11, %13 : vector<8x128xf32>
    %15 = tpu.iota {dimensions = array<i32: 1>} : vector<8x128xi32>
    %c4_i32 = arith.constant 4 : i32
    %16 = vector.broadcast %c4_i32 : i32 to vector<8x128xi32>
    %17 = arith.cmpi slt, %15, %16 : vector<8x128xi32>
    %cst_11 = arith.constant -1.000000e+30 : f32
    %18 = vector.broadcast %cst_11 : f32 to vector<8x128xf32>
    %19 = arith.select %17, %14, %18 : vector<8x128xi1>, vector<8x128xf32>
    %cst_12 = arith.constant dense<0xFF800000> : vector<8xf32>
    %20 = vector.multi_reduction <maximumf>, %19, %cst_12 [1] : vector<8x128xf32> to vector<8xf32>
    %21 = vector.shape_cast %20 : vector<8xf32> to vector<8x1xf32>
    %22 = vector.broadcast %21 : vector<8x1xf32> to vector<8x128xf32>
    %23 = arith.subf %19, %22 : vector<8x128xf32>
    %24 = math.exp %23 : vector<8x128xf32>
    %cst_13 = arith.constant dense<0.000000e+00> : vector<8xf32>
    %25 = vector.multi_reduction <add>, %24, %cst_13 [1] : vector<8x128xf32> to vector<8xf32>
    %26 = vector.shape_cast %25 : vector<8xf32> to vector<8x1xf32>
    %27 = tpu.reciprocal %26 {approx = true} : vector<8x1xf32> -> vector<8x1xf32>
    %28 = vector.broadcast %27 : vector<8x1xf32> to vector<8x128xf32>
    %29 = arith.mulf %24, %28 : vector<8x128xf32>
    %c4_i32_14 = arith.constant 4 : i32
    %30 = vector.broadcast %c4_i32_14 : i32 to vector<8x128xi32>
    %31 = arith.cmpi eq, %15, %30 : vector<8x128xi32>
    %cst_15 = arith.constant 0.000000e+00 : f32
    %32 = vector.broadcast %cst_15 : f32 to vector<8x128xf32>
    %33 = arith.select %31, %14, %32 : vector<8x128xi1>, vector<8x128xf32>
    %34 = arith.addf %29, %33 : vector<8x128xf32>
    %35 = arith.truncf %34 : vector<8x128xf32> to vector<8x128xbf16>
    %c0_16 = arith.constant 0 : index
    %c0_17 = arith.constant 0 : index
    %36 = vector.load %arg6[%c0_16, %c0_17] : memref<8x128xbf16, #tpu.memory_space<vmem>>, vector<8x128xbf16>
    tpu.vector_store %arg6[%c0_16, %c0_17], %35 {strides = array<i32>} : memref<8x128xbf16, #tpu.memory_space<vmem>>, vector<8x128xbf16>,
    return
  }
  func.func @transform_0(%arg0: i32) -> (i32, i32) {
    %c0_i32 = arith.constant 0 : i32
    %c0_i32_0 = arith.constant 0 : i32
    return %arg0, %c0_i32 : i32, i32
  }
  func.func @transform_1(%arg0: i32) -> (i32, i32) {
    %c0_i32 = arith.constant 0 : i32
    %c0_i32_0 = arith.constant 0 : i32
    %c0_i32_1 = arith.constant 0 : i32
    return %c0_i32, %c0_i32_0 : i32, i32
  }
  func.func @transform_2(%arg0: i32) -> (i32, i32) {
    %c0_i32 = arith.constant 0 : i32
    %c0_i32_0 = arith.constant 0 : i32
    %c0_i32_1 = arith.constant 0 : i32
    return %c0_i32, %c0_i32_0 : i32, i32
  }
  func.func @transform_3(%arg0: i32) -> (i32, i32) {
    %c0_i32 = arith.constant 0 : i32
    %c0_i32_0 = arith.constant 0 : i32
    %c0_i32_1 = arith.constant 0 : i32
    return %c0_i32, %c0_i32_0 : i32, i32
  }
  func.func @transform_4(%arg0: i32) -> (i32, i32) {
    %c0_i32 = arith.constant 0 : i32
    %c0_i32_0 = arith.constant 0 : i32
    %c0_i32_1 = arith.constant 0 : i32
    return %c0_i32, %c0_i32_0 : i32, i32
  }
  func.func @transform_5(%arg0: i32) -> (i32, i32) {
    %c0_i32 = arith.constant 0 : i32
    %c0_i32_0 = arith.constant 0 : i32
    return %arg0, %c0_i32 : i32, i32
  }
}

</mosaic_0001>

<llo_original>
// kernel: tpu_custom_call.1
$region0: #{tpu_custom_call.1}
  #allocation0 [shape = 'u32[]', space=smem, size = 0x4, offset = 0x4, fixed_abs, tag = 'smem constant byte address 0x4 - core index']
  #allocation1 [shape = 'u32[144,128]{1,0:T(1,128)}', space=vmem, size = 0x12000, scoped, tag = 'internal scratch']
  %s0 = inlined_call_operand.hbm [shape: f32[8,16], index: 0, kind: input, shape index: {}]
  %s1 = inlined_call_operand.hbm [shape: bf16[16,32], index: 1, kind: input, shape index: {}]
  %s2 = inlined_call_operand.vmem [shape: f32[1,32], index: 2, kind: input, shape index: {}]
  %s3 = inlined_call_operand.hbm [shape: bf16[32,128], index: 3, kind: input, shape index: {}]
  %s4 = inlined_call_operand.vmem [shape: f32[1,128], index: 4, kind: input, shape index: {}]
  %s5 = inlined_call_operand.hbm [shape: bf16[8,128], index: 5, kind: output, shape index: {}]
  %s6 = sld [smem:[#allocation0]]
  $region42: #{tpu_custom_call.1} parent=0
    _
  %s8 = ssub.s32 1, %s6
  %s9 = scalar_select 0, %s8, %s6
  $region1: #{tpu_custom_call.1} parent=0
    #allocation2 [shape = 'u8[4096]{0}', space=vmem, size = 0x1000, scoped, tag = 'input window, operand 0, single buffered']
    #allocation3 [shape = 's32[1]{0}', space=sflag, size = 0x4, scoped, tag = 'scoped memory for tpu_custom_call.1']
    #allocation4 [shape = 's32[1]{0}', space=sflag, size = 0x4, scoped, tag = 'scoped memory for tpu_custom_call.1']
    #allocation5 [shape = 'u8[4096]{0}', space=vmem, size = 0x1000, scoped, tag = 'input window, operand 1, single buffered']
    #allocation6 [shape = 's32[1]{0}', space=sflag, size = 0x4, scoped, tag = 'scoped memory for tpu_custom_call.1']
    #allocation7 [shape = 'u8[8192]{0}', space=vmem, size = 0x2000, scoped, tag = 'input window, operand 3, single buffered']
    #allocation8 [shape = 'u8[2048]{0}', space=vmem, size = 0x800, scoped, tag = 'output window, operand 0, single buffered']
    %10 = vsyncpa [#allocation3], 0
    %11 = vsyncpa [#allocation6], 0
    %12 = vsyncpa [#allocation4], 0
    // Predicated region
    $region2: #{tpu_custom_call.1} parent=1 // pred_check
      _
    $region3: #{tpu_custom_call.1} parent=1 // pred_check_branch
      %14 = sbr.rel (0) target = $region5
    $region4: #{tpu_custom_call.1} parent=1 // pred_region
      %s16 = ssub.s32 128, 128
      %17 = vsyncadd [#allocation3], %s16
      %s19 = sshll.u32 [#allocation2], 4
      %s20 = int_to_ptr.vmem [resolvable:$true] %s19
      %22 = dma.hbm_to_vmem [thread:$0]  %s0, 128, %s20, [#allocation3]
    $region5: #{tpu_custom_call.1} parent=1 // pred_fallthru
      _
    // Predicated region
    $region6: #{tpu_custom_call.1} parent=1 // pred_check
      _
    $region7: #{tpu_custom_call.1} parent=1 // pred_check_branch
      %24 = sbr.rel (0) target = $region9
    $region8: #{tpu_custom_call.1} parent=1 // pred_region
      %s26 = ssub.s32 128, 128
      %27 = vsyncadd [#allocation6], %s26
      %s28 = sshll.u32 [#allocation5], 4
      %s29 = int_to_ptr.vmem [resolvable:$true] %s28
      %34 = dma.hbm_to_vmem [thread:$0]  %s1, 128, %s29, [#allocation6], 64, 64, 4
    $region9: #{tpu_custom_call.1} parent=1 // pred_fallthru
      _
    // Predicated region
    $region10: #{tpu_custom_call.1} parent=1 // pred_check
      _
    $region11: #{tpu_custom_call.1} parent=1 // pred_check_branch
      %36 = sbr.rel (0) target = $region13
    $region12: #{tpu_custom_call.1} parent=1 // pred_region
      _
    $region13: #{tpu_custom_call.1} parent=1 // pred_fallthru
      _
    // Predicated region
    $region14: #{tpu_custom_call.1} parent=1 // pred_check
      _
    $region15: #{tpu_custom_call.1} parent=1 // pred_check_branch
      %38 = sbr.rel (0) target = $region17
    $region16: #{tpu_custom_call.1} parent=1 // pred_region
      %s40 = ssub.s32 256, 256
      %41 = vsyncadd [#allocation6], %s40
      %s42 = sshll.u32 [#allocation7], 4
      %s43 = int_to_ptr.vmem [resolvable:$true] %s42
      %48 = dma.hbm_to_vmem [thread:$0]  %s3, 256, %s43, [#allocation6], 64, 64, 4
    $region17: #{tpu_custom_call.1} parent=1 // pred_fallthru
      _
    // Predicated region
    $region18: #{tpu_custom_call.1} parent=1 // pred_check
      _
    $region19: #{tpu_custom_call.1} parent=1 // pred_check_branch
      %50 = sbr.rel (0) target = $region21
    $region20: #{tpu_custom_call.1} parent=1 // pred_region
      _
    $region21: #{tpu_custom_call.1} parent=1 // pred_fallthru
      _
    // Predicated region
    $region22: #{tpu_custom_call.1} parent=1 // pred_check
      _
    $region23: #{tpu_custom_call.1} parent=1 // pred_check_branch
      %52 = sbr.rel (0) target = $region25
    $region24: #{tpu_custom_call.1} parent=1 // pred_region
      %53 = dma.done [#allocation3], 128
    $region25: #{tpu_custom_call.1} parent=1 // pred_fallthru
      _
    // Predicated region
    $region26: #{tpu_custom_call.1} parent=1 // pred_check
      _
    $region27: #{tpu_custom_call.1} parent=1 // pred_check_branch
      %55 = sbr.rel (0) target = $region29
    $region28: #{tpu_custom_call.1} parent=1 // pred_region
      %56 = dma.done [#allocation6], 128
    $region29: #{tpu_custom_call.1} parent=1 // pred_fallthru
      _
    // Predicated region
    $region30: #{tpu_custom_call.1} parent=1 // pred_check
      _
    $region31: #{tpu_custom_call.1} parent=1 // pred_check_branch
      %58 = sbr.rel (0) target = $region33
    $region32: #{tpu_custom_call.1} parent=1 // pred_region
      %59 = dma.done [#allocation6], 256
    $region33: #{tpu_custom_call.1} parent=1 // pred_fallthru
      _
    %v61 = vld [vmem:[#allocation2] sm:$0xff]
    %v62 = vpack.c.bf16 %v61, %v61
    %v63 = vld [vmem:[#allocation5] sm:$0xf]
    %v64 = vld [vmem:[#allocation5 + $0x4] sm:$0xf]
    %v65 = vld [vmem:[%s2] sm:$0x1]
    %v67 = vlaneseq
    %v68 = vshrl.u32 %v67, 7
    %v69 = vsub.s32 0, %v68
    %v70 = vrot.slane %v65, %v69
    %v74 = vunpack.c.l.b16 %v63
    %v75 = vunpack.c.l.b16 %v64
    %v76 = vpack.c.b16 %v75, %v74
    %vm78 = vcmask 130048
    %v80 = vsel %vm78, %v62, 0
    %82 = vmatprep.subr.bf16.mxu0 0
    %83 = vmatpush1.bf16.msra.mxu0 %v76
    %84 = vmatprep.subr.bf16.mxu0 0
    %85 = vmatpush1.bf16.msra.mxu0 0
    %86 = vmatprep.subr.bf16.mxu0 0
    %87 = vmatpush1.bf16.msra.mxu0 0
    %88 = vmatprep.subr.bf16.mxu0 0
    %89 = vmatpush1.bf16.msra.mxu0 0
    %90 = vmatprep.subr.bf16.mxu0 0
    %91 = vmatpush1.bf16.msra.mxu0 0
    %92 = vmatprep.subr.bf16.mxu0 0
    %93 = vmatpush1.bf16.msra.mxu0 0
    %94 = vmatprep.subr.bf16.mxu0 0
    %95 = vmatpush1.bf16.msra.mxu0 0
    %96 = vmatprep.subr.bf16.mxu0 0
    %97 = vmatpush1.bf16.msra.mxu0 0
    %98 = vmatprep.subr.bf16.mxu0 0
    %99 = vmatpush1.bf16.msra.mxu0 0
    %100 = vmatprep.subr.bf16.mxu0 0
    %101 = vmatpush1.bf16.msra.mxu0 0
    %102 = vmatprep.subr.bf16.mxu0 0
    %103 = vmatpush1.bf16.msra.mxu0 0
    %104 = vmatprep.subr.bf16.mxu0 0
    %105 = vmatpush1.bf16.msra.mxu0 0
    %106 = vmatprep.subr.bf16.mxu0 0
    %107 = vmatpush1.bf16.msra.mxu0 0
    %108 = vmatprep.subr.bf16.mxu0 0
    %109 = vmatpush1.bf16.msra.mxu0 0
    %110 = vmatprep.subr.bf16.mxu0 0
    %111 = vmatpush1.bf16.msra.mxu0 0
    %112 = vmatprep.subr.bf16.mxu0 0
    %113 = vmatpush1.bf16.msra.mxu0 0
    %114 = vmatprep.mubr.bf16.mxu0 0
    %115 = vmatmul.mubr.bf16.gmra.mrb[0].mxu0 %v80
    %v116 = vpop.f32.mrb[0].mxu0
    %v117 = vadd.f32 %v70, %v116
    %v118 = vpop.f32.mrb[0].mxu0
    %v119 = vpop.f32.mrb[0].mxu0
    %v120 = vpop.f32.mrb[0].mxu0
    %121 = vdwg.mxu0
    %v122 = vmax.f32 %v117, 0.0
    %v123 = vpack.c.bf16 %v122, %v122
    %v124 = vld [vmem:[#allocation7] sm:$0xf]
    %v125 = vld [vmem:[#allocation7 + $0x4] sm:$0xf]
    %v126 = vld [vmem:[#allocation7 + $0x8] sm:$0xf]
    %v127 = vld [vmem:[#allocation7 + $0xc] sm:$0xf]
    %v128 = vld [vmem:[%s4] sm:$0x1]
    %v130 = vlaneseq
    %v131 = vshrl.u32 %v130, 7
    %v132 = vsub.s32 0, %v131
    %v133 = vrot.slane %v128, %v132
    %v139 = vunpack.c.l.b16 %v124
    %v140 = vunpack.c.l.b16 %v125
    %v141 = vunpack.c.l.b16 %v126
    %v142 = vunpack.c.l.b16 %v127
    %v143 = vpack.c.b16 %v140, %v139
    %v144 = vpack.c.b16 %v142, %v141
    %vm147 = vcmask 261120
    %v149 = vsel %vm147, %v123, 0
    %151 = vmatprep.subr.bf16.mxu0 0
    %152 = vmatpush1.bf16.msra.mxu0 %v143
    %153 = vmatprep.subr.bf16.mxu0 0
    %154 = vmatpush1.bf16.msra.mxu0 %v144
    %155 = vmatprep.subr.bf16.mxu0 0
    %156 = vmatpush1.bf16.msra.mxu0 0
    %157 = vmatprep.subr.bf16.mxu0 0
    %158 = vmatpush1.bf16.msra.mxu0 0
    %159 = vmatprep.subr.bf16.mxu0 0
    %160 = vmatpush1.bf16.msra.mxu0 0
    %161 = vmatprep.subr.bf16.mxu0 0
    %162 = vmatpush1.bf16.msra.mxu0 0
    %163 = vmatprep.subr.bf16.mxu0 0
    %164 = vmatpush1.bf16.msra.mxu0 0
    %165 = vmatprep.subr.bf16.mxu0 0
    %166 = vmatpush1.bf16.msra.mxu0 0
    %167 = vmatprep.subr.bf16.mxu0 0
    %168 = vmatpush1.bf16.msra.mxu0 0
    %169 = vmatprep.subr.bf16.mxu0 0
    %170 = vmatpush1.bf16.msra.mxu0 0
    %171 = vmatprep.subr.bf16.mxu0 0
    %172 = vmatpush1.bf16.msra.mxu0 0
    %173 = vmatprep.subr.bf16.mxu0 0
    %174 = vmatpush1.bf16.msra.mxu0 0
    %175 = vmatprep.subr.bf16.mxu0 0
    %176 = vmatpush1.bf16.msra.mxu0 0
    %177 = vmatprep.subr.bf16.mxu0 0
    %178 = vmatpush1.bf16.msra.mxu0 0
    %179 = vmatprep.subr.bf16.mxu0 0
    %180 = vmatpush1.bf16.msra.mxu0 0
    %181 = vmatprep.subr.bf16.mxu0 0
    %182 = vmatpush1.bf16.msra.mxu0 0
    %183 = vmatprep.mubr.bf16.mxu0 0
    %184 = vmatmul.mubr.bf16.gmra.mrb[0].mxu0 %v149
    %v185 = vpop.f32.mrb[0].mxu0
    %v186 = vadd.f32 %v133, %v185
    %v187 = vpop.f32.mrb[0].mxu0
    %v188 = vpop.f32.mrb[0].mxu0
    %v189 = vpop.f32.mrb[0].mxu0
    %190 = vdwg.mxu0
    %v191 = vlaneseq
    %v192 = vand.u32 %v191, 127
    %vm193 = vcmp.lt.s32.totalorder %v192, 4
    %v194 = vsel %vm193, %v186, -1e+30
    %195 = vmax.xlane.f32.xlu0 %v194
    %v196 = vpop.xlane.xlu0 %195
    %v197 = vsub.f32 %v194, %v196
    %v198 = vmul.f32 %v197, 1.442695
    %v199 = vpow.pop %v198
    %200 = vadd.xlane.f32.xlu0 %v199
    %v201 = vpop.xlane.xlu0 %200
    %v202 = vrcp.pop %v201
    %v203 = vmul.f32 %v199, %v202
    %vm204 = vcmp.eq.s32.totalorder %v192, 4
    %v205 = vsel %vm204, %v186, 0.0
    %v206 = vadd.f32 %v203, %v205
    %v207 = vpack.c.bf16 %v206, %v206
    %208 = vst [vmem:[#allocation8] sm:$0xf] %v207
    // Predicated region
    $region34: #{tpu_custom_call.1} parent=1 // pred_check
      _
    $region35: #{tpu_custom_call.1} parent=1 // pred_check_branch
      %210 = sbr.rel (0) target = $region37
    $region36: #{tpu_custom_call.1} parent=1 // pred_region
      %s212 = ssub.s32 64, 64
      %213 = vsyncadd [#allocation4], %s212
      %s215 = sshll.u32 [#allocation8], 4
      %s216 = int_to_ptr.vmem [resolvable:$true] %s215
      %218 = dma.vmem_to_hbm [thread:$0]  %s216, 64, %s5, [#allocation4]
    $region37: #{tpu_custom_call.1} parent=1 // pred_fallthru
      _
    // Predicated region
    $region38: #{tpu_custom_call.1} parent=1 // pred_check
      _
    $region39: #{tpu_custom_call.1} parent=1 // pred_check_branch
      %220 = sbr.rel (0) target = $region41
    $region40: #{tpu_custom_call.1} parent=1 // pred_region
      %221 = dma.done [#allocation4], 64
    $region41: #{tpu_custom_call.1} parent=1 // pred_fallthru
      _
    %222 = vsyncpa [#allocation3], 1
    %223 = vsyncpa [#allocation6], 1
    %224 = vsyncpa [#allocation4], 1

</llo_original>
